<compile_context>
chip_gen: v7x
topology: tpu7x:2x2x1
jax: 0.10.0
libtpu: 0.0.40
codegen_flags: <defaults>
</compile_context>

<pallas_src>
import functools
import math

import numpy as np
import jax
import jax.numpy as jnp
from jax.experimental import pallas as pl
from jax.experimental.pallas import tpu as pltpu


def _sinusoidal_kernel(t_ref, tab_ref, o_ref, *, g, exact_cos):
    """One grid step.

    t_ref   : (tbr, g)           f32 -- g batch elements packed per row
    tab_ref : (g+2, packed_dim)  f32 -- resident constants (same block every step):
              rows 0..g-1 : group-masked frequency rows (freq on own-group lanes, else 0)
              row  g      : phase (0 on sin lanes, pi/2 on cos lanes)
              row  g+1    : sin-lane mask (1.0 on sin lanes, 0.0 on cos lanes)
    o_ref   : (tbr, packed_dim)  -- lane-dense output tile, single full-tile store
    """
    # Batch-to-lane expansion fused with the frequency multiply:
    # lanes of group a contribute t[:, a] * freq, all other groups contribute exact 0.
    args = t_ref[:, 0:1] * tab_ref[0:1, :]
    for a in range(1, g):                      # static unroll, g <= 8
        args = args + t_ref[:, a:a + 1] * tab_ref[a:a + 1, :]

    if exact_cos:
        # Bit-comparable with the reference: separate sin / cos, one select.
        sin_lane = tab_ref[g + 1:g + 2, :] > 0.5
        out = jnp.where(sin_lane, jnp.sin(args), jnp.cos(args))
    else:
        # Single EUP pass: cos(x) == sin(x + pi/2) (|err| ~ 0.5*ulp(arg), see wrapper doc).
        out = jnp.sin(args + tab_ref[g:g + 1, :])

    o_ref[...] = out.astype(o_ref.dtype)


def sinusoidal_position_embeddings(
    time_vec: jax.Array,
    dim: int,
    *,
    out_dtype=jnp.float32,
    exact_cos: bool = False,
    max_block_rows: int = 8192,
    vmem_budget_bytes: int = 24 * 1024 * 1024,   # total tile residency incl. double-buffering
) -> jax.Array:
    """time_vec: (B,) -> (B, dim), matching the PyTorch module.

    Default path uses sin(x + pi/2) for the cos half; for timesteps ~1e3 this can differ
    from cos(x) by up to ~1e-4 absolute.  Pass exact_cos=True for bit-comparable cos.
    """
    assert dim % 2 == 0 and dim >= 4, "dim must be even and >= 4"
    b = int(time_vec.shape[0])
    half = dim // 2

    # ---- lane packing: fold g batch rows per vreg row so the output tile is a multiple
    #      of 128 lanes (unmasked, lane-dense stores). dim=32 -> g=4; dim=160 -> g=4. ----
    g = 128 // math.gcd(dim, 128)
    if g > 8:
        g = 1                      # rare dims; fall back to full-array last-dim block
    packed_dim = g * dim

    # ---- resident constant table (freqs masked per group, phase, sin mask) -----------
    # Frequencies computed exactly like the reference (f32 arange -> exp).
    scale = math.log(10000.0) / (half - 1)
    freqs_half = jnp.exp(jnp.arange(half, dtype=jnp.float32) * -scale)      # (half,)

    lane = np.arange(packed_dim)
    feat = lane % dim                                   # feature index within a group
    grp = lane // dim                                   # which packed batch element
    freq_idx = np.where(feat < half, feat, feat - half)
    onehot = (grp[None, :] == np.arange(g)[:, None]).astype(np.float32)     # (g, packed)
    phase = np.where(feat < half, 0.0, np.pi / 2.0).astype(np.float32)      # (packed,)
    sin_mask = (feat < half).astype(np.float32)                             # (packed,)

    freq_row = freqs_half[jnp.asarray(freq_idx)]                            # (packed,)
    tab = jnp.concatenate(
        [freq_row[None, :] * jnp.asarray(onehot),
         jnp.asarray(phase)[None, :],
         jnp.asarray(sin_mask)[None, :]],
        axis=0,
    )                                                                        # (g+2, packed)

    # ---- batch tiling: budget counts DOUBLE-buffered out + t tiles ---------------------
    out_itemsize = jnp.dtype(out_dtype).itemsize
    bytes_per_row = packed_dim * out_itemsize + g * 4
    cap = max(8, (vmem_budget_bytes // (2 * bytes_per_row)) // 8 * 8)
    tbr = max(8, min(max_block_rows, cap)) // 8 * 8

    rows = -(-b // g)                                   # ceil(b / g)
    if rows <= tbr:
        if rows >= 16:
            # Split into 2 parallel grid steps so both v7x TensorCores get work.
            tbr = ((-(-rows // 2)) + 7) // 8 * 8
            rows_p = 2 * tbr
        else:
            tbr = rows                                  # single full-array block
            rows_p = rows
    else:
        rows_p = -(-rows // tbr) * tbr
    grid = (rows_p // tbr,)

    b_padded = rows_p * g
    t = time_vec.astype(jnp.float32)
    if b_padded != b:
        t = jnp.pad(t, (0, b_padded - b))
    t_packed = t.reshape(rows_p, g)

    kernel = functools.partial(_sinusoidal_kernel, g=g, exact_cos=exact_cos)

    out_packed = pl.pallas_call(
        kernel,
        out_shape=jax.ShapeDtypeStruct((rows_p, packed_dim), out_dtype),
        grid=grid,
        in_specs=[
            pl.BlockSpec((tbr, g), lambda i: (i, 0)),
            pl.BlockSpec((g + 2, packed_dim), lambda i: (0, 0)),   # resident constant table
        ],
        out_specs=pl.BlockSpec((tbr, packed_dim), lambda i: (i, 0)),
        compiler_params=pltpu.CompilerParams(
            dimension_semantics=("parallel",),          # megacore-shard batch axis on v7x
            vmem_limit_bytes=max(32 * 1024 * 1024, vmem_budget_bytes + (8 << 20)),
        ),
    )(t_packed, tab)

    # (rows_p, g*dim) and (rows_p*g, dim) share the same row-major layout: free reshape.
    out = out_packed.reshape(b_padded, dim)
    return out[:b] if b_padded != b else out


def _reference(time_vec: jax.Array, dim: int) -> jax.Array:
    half_dim = dim // 2
    emb = math.log(10000.0) / (half_dim - 1)
    emb = jnp.exp(jnp.arange(half_dim, dtype=jnp.float32) * -emb)
    emb = time_vec.astype(jnp.float32)[:, None] * emb[None, :]
    return jnp.concatenate([jnp.sin(emb), jnp.cos(emb)], axis=-1)


if __name__ == "__main__":
    key = jax.random.PRNGKey(0)
    k0, k1, k2, k3 = jax.random.split(key, 4)

    # Primary case: diffusion timesteps, batch=8, dim=32 (lane-packed g=4, single block).
    batch, dim = 8, 32
    time_vec = jax.random.uniform(k0, (batch,), jnp.float32, 0.0, 1000.0)
    out = jax.block_until_ready(sinusoidal_position_embeddings(time_vec, dim))
    ref = _reference(time_vec, dim)
    assert out.shape == (batch, dim)
    # Phase-rewrite path: cos(x) computed as sin(x + pi/2); |err| <= ~ulp(1e3) ~ 6e-5.
    assert jnp.allclose(out, ref, atol=2e-4, rtol=1e-5), "mismatch vs reference (8, 32)"

    # Multi-tile pipelined path + batch padding (forced small blocks).
    tv2 = jax.random.uniform(k1, (100,), jnp.float32, 0.0, 1000.0)
    out2 = jax.block_until_ready(sinusoidal_position_embeddings(tv2, 32, max_block_rows=8))
    assert jnp.allclose(out2, _reference(tv2, 32), atol=2e-4, rtol=1e-5), "mismatch (100, 32)"

    # Generalized lane packing (dim=160 -> g=4, packed_dim=640) with the exact-cos path.
    tv3 = jax.random.uniform(k2, (24,), jnp.float32, 0.0, 1000.0)
    out3 = jax.block_until_ready(sinusoidal_position_embeddings(tv3, 160, exact_cos=True))
    assert jnp.allclose(out3, _reference(tv3, 160), atol=1e-5, rtol=1e-5), "mismatch (24, 160)"

    # Larger batch: exercises the >=2 parallel grid steps (v7x megacore) split.
    tv4 = jax.random.uniform(k3, (4096,), jnp.float32, 0.0, 1000.0)
    out4 = jax.block_until_ready(sinusoidal_position_embeddings(tv4, 128))
    assert jnp.allclose(out4, _reference(tv4, 128), atol=2e-4, rtol=1e-5), "mismatch (4096, 128)"

    print("KERNEL_OK")
</pallas_src>

<mosaic_0001>
module attributes {stable_mosaic.version = 11 : i64} {
  func.func @_sinusoidal_kernel(%arg0: i32, %arg1: memref<2x4xf32, #tpu.memory_space<vmem>>, %arg2: memref<6x128xf32, #tpu.memory_space<vmem>>, %arg3: memref<2x128xf32, #tpu.memory_space<vmem>>) attributes {dimension_semantics = [#tpu.dimension_semantics<parallel>], iteration_bounds = array<i64: 1>, scalar_prefetch = 0 : i64, scratch_operands = 0 : i64, tpu.core_type = #tpu.core_type<tc>, window_params = [{transform_indices = @transform_0, window_bounds = array<i64: 2, 4>}, {pipeline_mode = #tpu.pipeline_mode<synchronous>, transform_indices = @transform_1, window_bounds = array<i64: 6, 128>}, {transform_indices = @transform_2, window_bounds = array<i64: 2, 128>}]} {
    %c0 = arith.constant 0 : index
    %c0_0 = arith.constant 0 : index
    %0 = vector.load %arg1[%c0, %c0_0] : memref<2x4xf32, #tpu.memory_space<vmem>>, vector<2x1xf32>
    %c0_1 = arith.constant 0 : index
    %c0_2 = arith.constant 0 : index
    %1 = vector.load %arg2[%c0_1, %c0_2] : memref<6x128xf32, #tpu.memory_space<vmem>>, vector<1x128xf32>
    %2 = vector.broadcast %0 : vector<2x1xf32> to vector<2x128xf32>
    %3 = vector.broadcast %1 : vector<1x128xf32> to vector<2x128xf32>
    %4 = arith.mulf %2, %3 : vector<2x128xf32>
    %c0_3 = arith.constant 0 : index
    %c1 = arith.constant 1 : index
    %5 = vector.load %arg1[%c0_3, %c1] : memref<2x4xf32, #tpu.memory_space<vmem>>, vector<2x1xf32>
    %c1_4 = arith.constant 1 : index
    %c0_5 = arith.constant 0 : index
    %6 = vector.load %arg2[%c1_4, %c0_5] : memref<6x128xf32, #tpu.memory_space<vmem>>, vector<1x128xf32>
    %7 = vector.broadcast %5 : vector<2x1xf32> to vector<2x128xf32>
    %8 = vector.broadcast %6 : vector<1x128xf32> to vector<2x128xf32>
    %9 = arith.mulf %7, %8 : vector<2x128xf32>
    %10 = arith.addf %4, %9 : vector<2x128xf32>
    %c0_6 = arith.constant 0 : index
    %c2 = arith.constant 2 : index
    %11 = vector.load %arg1[%c0_6, %c2] : memref<2x4xf32, #tpu.memory_space<vmem>>, vector<2x1xf32>
    %c2_7 = arith.constant 2 : index
    %c0_8 = arith.constant 0 : index
    %12 = vector.load %arg2[%c2_7, %c0_8] : memref<6x128xf32, #tpu.memory_space<vmem>>, vector<1x128xf32>
    %13 = vector.broadcast %11 : vector<2x1xf32> to vector<2x128xf32>
    %14 = vector.broadcast %12 : vector<1x128xf32> to vector<2x128xf32>
    %15 = arith.mulf %13, %14 : vector<2x128xf32>
    %16 = arith.addf %10, %15 : vector<2x128xf32>
    %c0_9 = arith.constant 0 : index
    %c3 = arith.constant 3 : index
    %17 = vector.load %arg1[%c0_9, %c3] : memref<2x4xf32, #tpu.memory_space<vmem>>, vector<2x1xf32>
    %c3_10 = arith.constant 3 : index
    %c0_11 = arith.constant 0 : index
    %18 = vector.load %arg2[%c3_10, %c0_11] : memref<6x128xf32, #tpu.memory_space<vmem>>, vector<1x128xf32>
    %19 = vector.broadcast %17 : vector<2x1xf32> to vector<2x128xf32>
    %20 = vector.broadcast %18 : vector<1x128xf32> to vector<2x128xf32>
    %21 = arith.mulf %19, %20 : vector<2x128xf32>
    %22 = arith.addf %16, %21 : vector<2x128xf32>
    %c4 = arith.constant 4 : index
    %c0_12 = arith.constant 0 : index
    %23 = vector.load %arg2[%c4, %c0_12] : memref<6x128xf32, #tpu.memory_space<vmem>>, vector<1x128xf32>
    %24 = vector.broadcast %23 : vector<1x128xf32> to vector<2x128xf32>
    %25 = arith.addf %22, %24 : vector<2x128xf32>
    %26 = math.sin %25 : vector<2x128xf32>
    %c0_13 = arith.constant 0 : index
    %c0_14 = arith.constant 0 : index
    %27 = vector.load %arg3[%c0_13, %c0_14] : memref<2x128xf32, #tpu.memory_space<vmem>>, vector<2x128xf32>
    tpu.vector_store %arg3[%c0_13, %c0_14], %26 {strides = array<i32>} : memref<2x128xf32, #tpu.memory_space<vmem>>, vector<2x128xf32>,
    return
  }
  func.func @transform_0(%arg0: i32) -> (i32, i32) {
    %c0_i32 = arith.constant 0 : i32
    %c0_i32_0 = arith.constant 0 : i32
    return %arg0, %c0_i32 : i32, i32
  }
  func.func @transform_1(%arg0: i32) -> (i32, i32) {
    %c0_i32 = arith.constant 0 : i32
    %c0_i32_0 = arith.constant 0 : i32
    %c0_i32_1 = arith.constant 0 : i32
    return %c0_i32, %c0_i32_0 : i32, i32
  }
  func.func @transform_2(%arg0: i32) -> (i32, i32) {
    %c0_i32 = arith.constant 0 : i32
    %c0_i32_0 = arith.constant 0 : i32
    return %arg0, %c0_i32 : i32, i32
  }
}

</mosaic_0001>

<llo_original>
// kernel: tpu_custom_call.1
$region0: #{tpu_custom_call.1}
  #allocation0 [shape = 'u32[]', space=smem, size = 0x4, offset = 0x4, fixed_abs, tag = 'smem constant byte address 0x4 - core index']
  #allocation1 [shape = 'u32[144,128]{1,0:T(1,128)}', space=vmem, size = 0x12000, scoped, tag = 'internal scratch']
  %s0 = inlined_call_operand.hbm [shape: f32[2,4], index: 0, kind: input, shape index: {}]
  %s1 = inlined_call_operand.hbm [shape: f32[6,128], index: 1, kind: input, shape index: {}]
  %s2 = inlined_call_operand.hbm [shape: f32[2,128], index: 2, kind: output, shape index: {}]
  %s3 = sld [smem:[#allocation0]]
  $region26: #{tpu_custom_call.1} parent=0
    _
  %s5 = ssub.s32 1, %s3
  %s6 = scalar_select 0, %s5, %s3
  $region1: #{tpu_custom_call.1} parent=0
    #allocation2 [shape = 'u8[1024]{0}', space=vmem, size = 0x400, scoped, tag = 'input window, operand 0, single buffered']
    #allocation3 [shape = 's32[1]{0}', space=sflag, size = 0x4, scoped, tag = 'scoped memory for tpu_custom_call.1']
    #allocation4 [shape = 's32[1]{0}', space=sflag, size = 0x4, scoped, tag = 'scoped memory for tpu_custom_call.1']
    #allocation5 [shape = 'u8[4096]{0}', space=vmem, size = 0x1000, scoped, tag = 'input window, operand 1, single buffered']
    #allocation6 [shape = 's32[1]{0}', space=sflag, size = 0x4, scoped, tag = 'scoped memory for tpu_custom_call.1']
    #allocation7 [shape = 'u8[1024]{0}', space=vmem, size = 0x400, scoped, tag = 'output window, operand 0, single buffered']
    %7 = vsyncpa [#allocation3], 0
    %8 = vsyncpa [#allocation6], 0
    %9 = vsyncpa [#allocation4], 0
    // Predicated region
    $region2: #{tpu_custom_call.1} parent=1 // pred_check
      _
    $region3: #{tpu_custom_call.1} parent=1 // pred_check_branch
      %11 = sbr.rel (0) target = $region5
    $region4: #{tpu_custom_call.1} parent=1 // pred_region
      %s13 = ssub.s32 32, 32
      %14 = vsyncadd [#allocation3], %s13
      %s16 = sshll.u32 [#allocation2], 4
      %s17 = int_to_ptr.vmem [resolvable:$true] %s16
      %19 = dma.hbm_to_vmem [thread:$0]  %s0, 32, %s17, [#allocation3]
    $region5: #{tpu_custom_call.1} parent=1 // pred_fallthru
      _
    // Predicated region
    $region6: #{tpu_custom_call.1} parent=1 // pred_check
      _
    $region7: #{tpu_custom_call.1} parent=1 // pred_check_branch
      %21 = sbr.rel (0) target = $region9
    $region8: #{tpu_custom_call.1} parent=1 // pred_region
      %s23 = ssub.s32 128, 128
      %24 = vsyncadd [#allocation6], %s23
      %s26 = sshll.u32 [#allocation5], 4
      %s27 = int_to_ptr.vmem [resolvable:$true] %s26
      %29 = dma.hbm_to_vmem [thread:$0]  %s1, 128, %s27, [#allocation6]
    $region9: #{tpu_custom_call.1} parent=1 // pred_fallthru
      _
    // Predicated region
    $region10: #{tpu_custom_call.1} parent=1 // pred_check
      _
    $region11: #{tpu_custom_call.1} parent=1 // pred_check_branch
      %31 = sbr.rel (0) target = $region13
    $region12: #{tpu_custom_call.1} parent=1 // pred_region
      %32 = dma.done [#allocation3], 32
    $region13: #{tpu_custom_call.1} parent=1 // pred_fallthru
      _
    // Predicated region
    $region14: #{tpu_custom_call.1} parent=1 // pred_check
      _
    $region15: #{tpu_custom_call.1} parent=1 // pred_check_branch
      %34 = sbr.rel (0) target = $region17
    $region16: #{tpu_custom_call.1} parent=1 // pred_region
      %35 = dma.done [#allocation6], 128
    $region17: #{tpu_custom_call.1} parent=1 // pred_fallthru
      _
    %v36 = vld [vmem:[#allocation2] sm:$0x3]
    %v37 = vld [vmem:[#allocation5] sm:$0x1]
    %39 = vset.pattern.permute.xlu0 0
    %40 = vperm.xlu0 %39, %v36
    %v41 = vpop.permute.xlu0 %40
    %v43 = vlaneseq
    %v44 = vshrl.u32 %v43, 7
    %v45 = vsub.s32 0, %v44
    %v46 = vrot.slane %v37, %v45
    %v47 = vmul.f32 %v41, %v46
    %v48 = vld [vmem:[#allocation5 + $0x1] sm:$0x1]
    %49 = vset.pattern.permute.xlu0 1
    %50 = vperm.xlu0 %49, %v36
    %v51 = vpop.permute.xlu0 %50
    %v53 = vlaneseq
    %v54 = vshrl.u32 %v53, 7
    %v55 = vsub.s32 0, %v54
    %v56 = vrot.slane %v48, %v55
    %v57 = vmul.f32 %v51, %v56
    %v58 = vadd.f32 %v47, %v57
    %v59 = vld [vmem:[#allocation5 + $0x2] sm:$0x1]
    %60 = vset.pattern.permute.xlu0 2
    %61 = vperm.xlu0 %60, %v36
    %v62 = vpop.permute.xlu0 %61
    %v64 = vlaneseq
    %v65 = vshrl.u32 %v64, 7
    %v66 = vsub.s32 0, %v65
    %v67 = vrot.slane %v59, %v66
    %v68 = vmul.f32 %v62, %v67
    %v69 = vadd.f32 %v58, %v68
    %v70 = vld [vmem:[#allocation5 + $0x3] sm:$0x1]
    %71 = vset.pattern.permute.xlu0 3
    %72 = vperm.xlu0 %71, %v36
    %v73 = vpop.permute.xlu0 %72
    %v75 = vlaneseq
    %v76 = vshrl.u32 %v75, 7
    %v77 = vsub.s32 0, %v76
    %v78 = vrot.slane %v70, %v77
    %v79 = vmul.f32 %v73, %v78
    %v80 = vadd.f32 %v69, %v79
    %v81 = vld [vmem:[#allocation5 + $0x4] sm:$0x1]
    %v82 = vlaneseq
    %v83 = vshrl.u32 %v82, 7
    %v84 = vsub.s32 0, %v83
    %v85 = vrot.slane %v81, %v84
    %v86 = vadd.f32 %v80, %v85
    %v87 = vand.u32 2147483647, %v86
    %vm88 = vcmp.le.f32.partialorder %v87, 0.7853982
    %vm89 = vcmp.lt.s32.totalorder %v86, 0
    %v90 = vand.u32 %v86, 2139095040
    %v91 = vshrl.u32 %v90, 23
    %v92 = vsub.s32 %v91, 127
    %v93 = vand.u32 2147483647, %v86
    %v94 = vand.u32 %v93, 8388607
    %v95 = vor.u32 %v94, 8388608
    %v96 = vsub.s32 0, %v95
    %v97 = vadd.s32 %v92, 1
    %vm98 = vcmp.gt.s32.totalorder %v97, 0
    %v99 = vsel %vm98, %v97, 0
    %v100 = vshrl.u32 %v99, 5
    %v101 = vand.u32 %v99, 31
    %v102 = vsub.s32 32, %v101
    %v103 = vshrl.u32 683565275, %v102
    %v104 = vshll.u32 683565275, %v101
    %v105 = vshrl.u32 2475754826, %v102
    %v106 = vor.u32 %v104, %v105
    %v107 = vshll.u32 2475754826, %v101
    %v108 = vshrl.u32 2131351028, %v102
    %v109 = vor.u32 %v107, %v108
    %v110 = vshll.u32 2131351028, %v101
    %v111 = vshrl.u32 2102212464, %v102
    %v112 = vor.u32 %v110, %v111
    %v113 = vshll.u32 2102212464, %v101
    %v114 = vshrl.u32 920167782, %v102
    %v115 = vor.u32 %v113, %v114
    %v116 = vshll.u32 920167782, %v101
    %v117 = vshrl.u32 1326507024, %v102
    %v118 = vor.u32 %v116, %v117
    %vm119 = vcmp.lt.s32.totalorder %v100, 1
    %vm120 = vcmp.lt.s32.totalorder %v100, 2
    %vm121 = vcmp.lt.s32.totalorder %v100, 3
    %vm122 = vcmp.lt.s32.totalorder %v100, 4
    %v123 = vsel %vm119, %v103, %v106
    %v124 = vsel %vm122, %v112, 2102212464
    %v125 = vsel %vm121, %v109, %v124
    %v126 = vsel %vm120, %v123, %v125
    %v127 = vsel %vm119, %v106, %v109
    %v128 = vsel %vm122, %v115, 920167782
    %v129 = vsel %vm121, %v112, %v128
    %v130 = vsel %vm120, %v127, %v129
    %v131 = vsel %vm119, %v109, %v112
    %v132 = vsel %vm122, %v118, 1326507024
    %v133 = vsel %vm121, %v115, %v132
    %v134 = vsel %vm120, %v131, %v133
    %v135 = vshll.u32 %v95, 8
    %v136 = vmul.u32.u64.compose %v135, %v134
    %v137 = vextract.low.u32 %v136
    %v138 = vextract.high.u32 %v136
    %v139 = vmul.u32.u64.compose %v135, %v130
    %v140 = vextract.low.u32 %v139
    %v141 = vextract.high.u32 %v139
    %v142 = vmul.u32 %v135, %v126
    %v143 = vadd.s32 %v138, %v140
    %vm144 = vc.u32 %v138, %v140
    %v145 = vadd.s32 %v141, 1
    %v146 = vsel %vm144, %v145, %v141
    %v147 = vadd.s32 %v142, %v146
    %v148 = vadd.s32 %v147, 536870912
    %v149 = vshrl.u32 %v148, 30
    %v150 = vshll.u32 %v149, 30
    %v151 = vsub.s32 %v147, %v150
    %vm152 = vcmp.lt.s32.totalorder %v151, 0
    %v153 = vsub.s32 0, %v151
    %v154 = vsel %vm152, %v153, %v151
    %v155 = vclz %v154
    %v156 = vsub.s32 %v155, 2
    %vm157 = vcmp.gt.s32.totalorder 0, %v156
    %v158 = vsel %vm157, 0, %v156
    %v159 = vsub.s32 32, %v158
    %v160 = vshll.u32 %v151, %v158
    %v161 = vshrl.u32 %v143, %v159
    %v162 = vor.u32 %v160, %v161
    %v163 = vsub.s32 4294967266, %v158
    %v164 = vadd.s32 %v163, 127
    %v165 = vshll.u32 %v164, 23
    %v166 = vor.u32 4788187, %v165
    %v167 = vand.u32 2147483647, %v166
    %v169 = vcvt.s32.f32 %v162
    %v170 = vmul.f32 %v169, %v167
    %v171 = vxor.u32 %v170, 2147483648
    %v172 = vsel %vm89, %v171, %v170
    %v173 = vsub.s32 4, %v149
    %v174 = vsel %vm89, %v173, %v149
    %v175 = vsel %vm88, %v86, %v172
    %v176 = vsel %vm88, 0, %v174
    %v177 = vcosq.f32.pop %v175
    %v178 = vsinq.f32.pop %v175
    %vm179 = vweird.f32 %v86
    %v180 = vadd.s32 %v176, 3
    %v181 = vand.u32 %v180, 3
    %vm182 = vcmp.lt.s32.totalorder %v181, 2
    %vm183 = vcmp.eq.s32.totalorder %v181, 0
    %v184 = vxor.u32 %v178, 2147483648
    %v185 = vsel %vm183, %v177, %v184
    %vm186 = vcmp.eq.s32.totalorder %v181, 2
    %v187 = vxor.u32 %v177, 2147483648
    %v188 = vsel %vm186, %v187, %v178
    %v189 = vsel %vm182, %v185, %v188
    %v190 = vsel %vm179, nan, %v189
    %191 = vst [vmem:[#allocation7] sm:$0x3] %v190
    // Predicated region
    $region18: #{tpu_custom_call.1} parent=1 // pred_check
      _
    $region19: #{tpu_custom_call.1} parent=1 // pred_check_branch
      %193 = sbr.rel (0) target = $region21
    $region20: #{tpu_custom_call.1} parent=1 // pred_region
      %s195 = ssub.s32 32, 32
      %196 = vsyncadd [#allocation4], %s195
      %s198 = sshll.u32 [#allocation7], 4
      %s199 = int_to_ptr.vmem [resolvable:$true] %s198
      %201 = dma.vmem_to_hbm [thread:$0]  %s199, 32, %s2, [#allocation4]
    $region21: #{tpu_custom_call.1} parent=1 // pred_fallthru
      _
    // Predicated region
    $region22: #{tpu_custom_call.1} parent=1 // pred_check
      _
    $region23: #{tpu_custom_call.1} parent=1 // pred_check_branch
      %203 = sbr.rel (0) target = $region25
    $region24: #{tpu_custom_call.1} parent=1 // pred_region
      %204 = dma.done [#allocation4], 32
    $region25: #{tpu_custom_call.1} parent=1 // pred_fallthru
      _
    %205 = vsyncpa [#allocation3], 1
    %206 = vsyncpa [#allocation6], 1
    %207 = vsyncpa [#allocation4], 1

</llo_original>
